<compile_context>
chip_gen: v5e
topology: v5e:2x2
jax: 0.10.0
libtpu: 0.0.40
codegen_flags: <defaults>
</compile_context>

<pallas_src>
import math
import functools

import jax
import jax.numpy as jnp
from jax.experimental import pallas as pl
from jax.experimental.pallas import tpu as pltpu

PAD_ID = 0
UNK_ID = 1
NEG_INF = -1e9


# ------------------------------- helpers ------------------------------------

def _rup(x, m):
    return ((x + m - 1) // m) * m


def _pad2(a, rows, cols):
    r, c = a.shape
    if r == rows and c == cols:
        return a
    return jnp.pad(a, ((0, rows - r), (0, cols - c)))


# --------------------------- tiled linear kernel -----------------------------

def _linear_kernel(x_ref, w_ref, b_ref, o_ref, acc_ref):
    k = pl.program_id(2)

    @pl.when(k == 0)
    def _():
        acc_ref[...] = jnp.zeros_like(acc_ref)

    acc_ref[...] += jnp.dot(x_ref[...].astype(jnp.bfloat16), w_ref[...],
                            preferred_element_type=jnp.float32)

    @pl.when(k == pl.num_programs(2) - 1)
    def _():
        o_ref[...] = acc_ref[...] + b_ref[...]


def linear(x2d, w, b, *, tm=256, tn=512, tk=512):
    """x2d: (M, K) f32, w: (K, N) bf16, b: (N,) f32 -> (M, N) f32."""
    M, K = x2d.shape
    N = w.shape[1]
    tm = min(tm, _rup(M, 8))
    tn = min(tn, _rup(N, 128))
    tk = min(tk, _rup(K, 128))
    Mp, Kp, Np = _rup(M, tm), _rup(K, tk), _rup(N, tn)
    xp = _pad2(x2d, Mp, Kp)
    wp = _pad2(w, Kp, Np)
    bp = jnp.pad(b, (0, Np - N)).reshape(1, Np)
    out = pl.pallas_call(
        _linear_kernel,
        out_shape=jax.ShapeDtypeStruct((Mp, Np), jnp.float32),
        grid=(Mp // tm, Np // tn, Kp // tk),
        in_specs=[pl.BlockSpec((tm, tk), lambda i, j, k: (i, k)),
                  pl.BlockSpec((tk, tn), lambda i, j, k: (k, j)),
                  pl.BlockSpec((1, tn), lambda i, j, k: (0, j))],
        out_specs=pl.BlockSpec((tm, tn), lambda i, j, k: (i, j)),
        scratch_shapes=[pltpu.VMEM((tm, tn), jnp.float32)],
        compiler_params=pltpu.CompilerParams(
            dimension_semantics=("parallel", "parallel", "arbitrary")),
    )(xp, wp, bp)
    return out[:M, :N]


# ----------------------- fused residual-add + LayerNorm ----------------------

def _add_ln_kernel(x_ref, r_ref, g_ref, b_ref, o_ref):
    x = x_ref[...] + r_ref[...]
    mean = jnp.mean(x, axis=-1, keepdims=True)
    var = jnp.mean((x - mean) ** 2, axis=-1, keepdims=True)
    o_ref[...] = (x - mean) * jax.lax.rsqrt(var + 1e-5) * g_ref[...] + b_ref[...]


def add_layer_norm(x2d, r2d, g, b, *, tm=256):
    M, D = x2d.shape
    tm = min(tm, _rup(M, 8))
    Mp = _rup(M, tm)
    out = pl.pallas_call(
        _add_ln_kernel,
        out_shape=jax.ShapeDtypeStruct((Mp, D), jnp.float32),
        grid=(Mp // tm,),
        in_specs=[pl.BlockSpec((tm, D), lambda i: (i, 0)),
                  pl.BlockSpec((tm, D), lambda i: (i, 0)),
                  pl.BlockSpec((1, D), lambda i: (0, 0)),
                  pl.BlockSpec((1, D), lambda i: (0, 0))],
        out_specs=pl.BlockSpec((tm, D), lambda i: (i, 0)),
        compiler_params=pltpu.CompilerParams(dimension_semantics=("parallel",)),
    )(_pad2(x2d, Mp, D), _pad2(r2d, Mp, D), g.reshape(1, D), b.reshape(1, D))
    return out[:M]


# ---------------- fused FFN (w1 -> ReLU -> w2) + residual + LN ---------------

def _ffn_ln_kernel(x_ref, w1_ref, b1_ref, w2_ref, b2_ref, g_ref, b_ref, o_ref):
    x = x_ref[...]
    h = jnp.dot(x.astype(jnp.bfloat16), w1_ref[...],
                preferred_element_type=jnp.float32) + b1_ref[...]
    h = jnp.maximum(h, 0.0)
    y = jnp.dot(h.astype(jnp.bfloat16), w2_ref[...],
                preferred_element_type=jnp.float32) + b2_ref[...]
    y = x + y
    mean = jnp.mean(y, axis=-1, keepdims=True)
    var = jnp.mean((y - mean) ** 2, axis=-1, keepdims=True)
    o_ref[...] = (y - mean) * jax.lax.rsqrt(var + 1e-5) * g_ref[...] + b_ref[...]


def ffn_ln(x2d, w1, b1, w2, b2, g, b, *, tm=256):
    M, D = x2d.shape
    H = w1.shape[1]
    tm = min(tm, _rup(M, 8))
    Mp = _rup(M, tm)
    out = pl.pallas_call(
        _ffn_ln_kernel,
        out_shape=jax.ShapeDtypeStruct((Mp, D), jnp.float32),
        grid=(Mp // tm,),
        in_specs=[pl.BlockSpec((tm, D), lambda i: (i, 0)),
                  pl.BlockSpec((D, H), lambda i: (0, 0)),
                  pl.BlockSpec((1, H), lambda i: (0, 0)),
                  pl.BlockSpec((H, D), lambda i: (0, 0)),
                  pl.BlockSpec((1, D), lambda i: (0, 0)),
                  pl.BlockSpec((1, D), lambda i: (0, 0)),
                  pl.BlockSpec((1, D), lambda i: (0, 0))],
        out_specs=pl.BlockSpec((tm, D), lambda i: (i, 0)),
        compiler_params=pltpu.CompilerParams(dimension_semantics=("parallel",)),
    )(_pad2(x2d, Mp, D), w1, b1.reshape(1, H), w2, b2.reshape(1, D),
      g.reshape(1, D), b.reshape(1, D))
    return out[:M]


# ------------------- multi-head attention (all heads / batch) ----------------

def _mha_kernel(q_ref, k_ref, v_ref, m_ref, o_ref, *, nhead, scale):
    q = q_ref[0].astype(jnp.bfloat16)                     # (Lq, D)
    k = k_ref[0].astype(jnp.bfloat16)                     # (Lk, D)
    v = v_ref[0].astype(jnp.bfloat16)                     # (Lk, D)
    m = m_ref[0]                                          # (Lq, Lk) additive, f32
    D = q.shape[-1]
    Dh = D // nhead
    for h in range(nhead):                                # static loop over heads
        lo = h * Dh
        s = jax.lax.dot_general(q[:, lo:lo + Dh], k[:, lo:lo + Dh],
                                (((1,), (1,)), ((), ())),
                                preferred_element_type=jnp.float32)
        s = s * scale + m
        s = s - jnp.max(s, axis=-1, keepdims=True)
        p = jnp.exp(s)
        p = p * pl.reciprocal(jnp.sum(p, axis=-1, keepdims=True), approx=True)
        o_ref[0, :, lo:lo + Dh] = jnp.dot(p.astype(jnp.bfloat16), v[:, lo:lo + Dh],
                                          preferred_element_type=jnp.float32)


def mha(q, k, v, mask, nhead):
    """q: (B, Lq, D), k/v: (B, Lk, D), mask: (B, Lq, Lk) additive -> (B, Lq, D)."""
    B, Lq, D = q.shape
    Lk = k.shape[1]
    scale = 1.0 / math.sqrt(D // nhead)
    return pl.pallas_call(
        functools.partial(_mha_kernel, nhead=nhead, scale=scale),
        out_shape=jax.ShapeDtypeStruct((B, Lq, D), jnp.float32),
        grid=(B,),
        in_specs=[pl.BlockSpec((1, Lq, D), lambda i: (i, 0, 0)),
                  pl.BlockSpec((1, Lk, D), lambda i: (i, 0, 0)),
                  pl.BlockSpec((1, Lk, D), lambda i: (i, 0, 0)),
                  pl.BlockSpec((1, Lq, Lk), lambda i: (i, 0, 0))],
        out_specs=pl.BlockSpec((1, Lq, D), lambda i: (i, 0, 0)),
        compiler_params=pltpu.CompilerParams(dimension_semantics=("parallel",)),
    )(q, k, v, mask)


def multi_head_attention(x_q, x_kv, p, mask, nhead, self_attention):
    B, Lq, D = x_q.shape
    Lk = x_kv.shape[1]
    if self_attention:
        qkv = linear(x_q.reshape(B * Lq, D), p["wqkv"], p["bqkv"])
        qkv = qkv.reshape(B, Lq, 3 * D)
        q, k, v = qkv[..., :D], qkv[..., D:2 * D], qkv[..., 2 * D:]
    else:
        q = linear(x_q.reshape(B * Lq, D), p["wq"], p["bq"]).reshape(B, Lq, D)
        kv = linear(x_kv.reshape(B * Lk, D), p["wkv"], p["bkv"]).reshape(B, Lk, 2 * D)
        k, v = kv[..., :D], kv[..., D:]
    o = mha(q, k, v, mask, nhead)
    return linear(o.reshape(B * Lq, D), p["wo"], p["bo"]).reshape(B, Lq, D)


# ------------- copy attention fused with target-position reduction -----------

def _copy_attn_kernel(h_ref, e_ref, am_ref, cm_ref, o_ref, *, scale):
    h = h_ref[0].astype(jnp.bfloat16)                     # (Lt, D)
    e = e_ref[0].astype(jnp.bfloat16)                     # (Ls, D)
    s = jax.lax.dot_general(h, e, (((1,), (1,)), ((), ())),
                            preferred_element_type=jnp.float32)
    s = s * scale + am_ref[0]
    s = s - jnp.max(s, axis=-1, keepdims=True)
    p = jnp.exp(s)
    p = p * pl.reciprocal(jnp.sum(p, axis=-1, keepdims=True), approx=True)
    o_ref[0] = jnp.sum(p * cm_ref[0], axis=-1, keepdims=True)


def copy_attention_tok(h, e, add_mask, copy_mask):
    """Per-token copy probability sum(softmax(h·eᵀ) * copy_idx_mask) -> (B, Lt)."""
    B, Lt, D = h.shape
    Ls = e.shape[1]
    scale = 1.0 / math.sqrt(D)
    out = pl.pallas_call(
        functools.partial(_copy_attn_kernel, scale=scale),
        out_shape=jax.ShapeDtypeStruct((B, Lt, 1), jnp.float32),
        grid=(B,),
        in_specs=[pl.BlockSpec((1, Lt, D), lambda i: (i, 0, 0)),
                  pl.BlockSpec((1, Ls, D), lambda i: (i, 0, 0)),
                  pl.BlockSpec((1, Lt, Ls), lambda i: (i, 0, 0)),
                  pl.BlockSpec((1, Lt, Ls), lambda i: (i, 0, 0))],
        out_specs=pl.BlockSpec((1, Lt, 1), lambda i: (i, 0, 0)),
        compiler_params=pltpu.CompilerParams(dimension_semantics=("parallel",)),
    )(h, e, add_mask, copy_mask)
    return out[..., 0]


# --------- fused vocab head: streaming softmax + gather + gate + mixture -----

def _vocab_tail_kernel(h_ref, wg_ref, bg_ref, wgate_ref, bgate_ref,
                       tgt_ref, genm_ref, copyp_ref, o_ref,
                       m_sc, l_sc, t_sc):
    j = pl.program_id(1)

    @pl.when(j == 0)
    def _():
        m_sc[...] = jnp.full_like(m_sc, -jnp.inf)
        l_sc[...] = jnp.zeros_like(l_sc)
        t_sc[...] = jnp.zeros_like(t_sc)

    h = h_ref[...]                                        # (tm, D) f32
    logits = (jnp.dot(h.astype(jnp.bfloat16), wg_ref[...],
                      preferred_element_type=jnp.float32) + bg_ref[...])
    tm, tv = logits.shape
    cols = jax.lax.broadcasted_iota(jnp.int32, (tm, tv), 1) + j * tv
    onehot = (cols == tgt_ref[...]).astype(jnp.float32)
    t_sc[...] += jnp.sum(logits * onehot, axis=-1, keepdims=True)

    m_new = jnp.maximum(m_sc[...], jnp.max(logits, axis=-1, keepdims=True))
    l_sc[...] = (l_sc[...] * jnp.exp(m_sc[...] - m_new)
                 + jnp.sum(jnp.exp(logits - m_new), axis=-1, keepdims=True))
    m_sc[...] = m_new

    @pl.when(j == pl.num_programs(1) - 1)
    def _():
        p_tgt = jnp.exp(t_sc[...] - m_sc[...]) * pl.reciprocal(l_sc[...], approx=True)
        gate = jax.nn.sigmoid(jnp.dot(h, wgate_ref[...],
                                      preferred_element_type=jnp.float32)
                              + bgate_ref[...])
        prob = gate * p_tgt * genm_ref[...] + (1.0 - gate) * copyp_ref[...]
        o_ref[...] = jnp.log(prob + 1e-9)


def vocab_tail(h2d, w_gen, b_gen, w_gate, b_gate, tgt, gen_m, copy_p,
               *, tm=256, tv=512):
    """Fused vocab softmax + target gather + gate + generate/copy mixture.
    Never materializes the (M, V) probability matrix."""
    M, D = h2d.shape
    V = w_gen.shape[1]
    tm = min(tm, _rup(M, 8))
    tv = min(tv, _rup(V, 128))
    Mp, Vp = _rup(M, tm), _rup(V, tv)
    hp = _pad2(h2d, Mp, D)
    wgp = _pad2(w_gen, D, Vp)
    # padded vocab columns get -1e9 bias so they never contribute to the softmax
    bgp = jnp.pad(b_gen, (0, Vp - V), constant_values=NEG_INF).reshape(1, Vp)
    out = pl.pallas_call(
        _vocab_tail_kernel,
        out_shape=jax.ShapeDtypeStruct((Mp, 1), jnp.float32),
        grid=(Mp // tm, Vp // tv),
        in_specs=[pl.BlockSpec((tm, D), lambda i, j: (i, 0)),
                  pl.BlockSpec((D, tv), lambda i, j: (0, j)),
                  pl.BlockSpec((1, tv), lambda i, j: (0, j)),
                  pl.BlockSpec((D, 1), lambda i, j: (0, 0)),
                  pl.BlockSpec((1, 1), lambda i, j: (0, 0)),
                  pl.BlockSpec((tm, 1), lambda i, j: (i, 0)),
                  pl.BlockSpec((tm, 1), lambda i, j: (i, 0)),
                  pl.BlockSpec((tm, 1), lambda i, j: (i, 0))],
        out_specs=pl.BlockSpec((tm, 1), lambda i, j: (i, 0)),
        scratch_shapes=[pltpu.VMEM((tm, 1), jnp.float32),
                        pltpu.VMEM((tm, 1), jnp.float32),
                        pltpu.VMEM((tm, 1), jnp.float32)],
        compiler_params=pltpu.CompilerParams(
            dimension_semantics=("parallel", "arbitrary")),
    )(hp, wgp, bgp, w_gate, b_gate.reshape(1, 1),
      _pad2(tgt, Mp, 1), _pad2(gen_m, Mp, 1), _pad2(copy_p, Mp, 1))
    return out[:M]


# ------------------------------- model glue ----------------------------------

def positional_encoding(L, D):
    pos = jnp.arange(L)[:, None].astype(jnp.float32)
    div = jnp.exp(jnp.arange(0, D, 2).astype(jnp.float32)
                  * (-math.log(10000.0) / D))
    pe = jnp.zeros((L, D), jnp.float32)
    pe = pe.at[:, 0::2].set(jnp.sin(pos * div))
    pe = pe.at[:, 1::2].set(jnp.cos(pos * div))
    return pe


def encoder_layer(x, p, self_mask, nhead):
    B, L, D = x.shape
    a = multi_head_attention(x, x, p["attn"], self_mask, nhead, True)
    x2 = add_layer_norm(x.reshape(B * L, D), a.reshape(B * L, D),
                        p["ln1_g"], p["ln1_b"])
    x2 = ffn_ln(x2, p["w1"], p["b1"], p["w2"], p["b2"], p["ln2_g"], p["ln2_b"])
    return x2.reshape(B, L, D)


def decoder_layer(y, enc_out, p, self_mask, cross_mask, nhead):
    B, Lt, D = y.shape
    a = multi_head_attention(y, y, p["self_attn"], self_mask, nhead, True)
    y2 = add_layer_norm(y.reshape(B * Lt, D), a.reshape(B * Lt, D),
                        p["ln1_g"], p["ln1_b"]).reshape(B, Lt, D)
    c = multi_head_attention(y2, enc_out, p["cross_attn"], cross_mask, nhead, False)
    y3 = add_layer_norm(y2.reshape(B * Lt, D), c.reshape(B * Lt, D),
                        p["ln2_g"], p["ln2_b"])
    y3 = ffn_ln(y3, p["w1"], p["b1"], p["w2"], p["b2"], p["ln3_g"], p["ln3_b"])
    return y3.reshape(B, Lt, D)


def copy_transformer_forward(params, src_inputs, tgt_inputs, lengths, nhead):
    """src_inputs: (B, Ls) int32; tgt_inputs: (B, Lt+1) int32 (with boundary syms);
    lengths: (B,) true source lengths.  Returns per-token log-probabilities of the
    target tokens under the generate+copy mixture, shape (B, Lt)."""
    B, Ls = src_inputs.shape
    Lt = tgt_inputs.shape[1] - 1
    D = params["enc_emb"].shape[1]

    # masks (same role as length_array_to_mask_tensor / causal tgt mask)
    src_pad = jnp.arange(Ls)[None, :] >= lengths[:, None]                # True=pad
    src_key_mask = jnp.where(src_pad, NEG_INF, 0.0).astype(jnp.float32)  # additive
    enc_self_mask = jnp.broadcast_to(src_key_mask[:, None, :], (B, Ls, Ls))
    causal = jnp.where(jnp.arange(Lt)[:, None] >= jnp.arange(Lt)[None, :],
                       0.0, NEG_INF).astype(jnp.float32)
    dec_self_mask = jnp.broadcast_to(causal[None], (B, Lt, Lt))
    cross_mask = jnp.broadcast_to(src_key_mask[:, None, :], (B, Lt, Ls))

    # ----- encoder -----
    x = jnp.take(params["enc_emb"], src_inputs, axis=0) * math.sqrt(D)
    x = x + positional_encoding(Ls, D)[None]
    for lp in params["enc_layers"]:
        x = encoder_layer(x, lp, enc_self_mask, nhead)
    enc_out = x                                                          # (B, Ls, D)

    # ----- decoder -----
    dec_in = tgt_inputs[:, :-1]
    dec_tgt = tgt_inputs[:, 1:]
    y = jnp.take(params["dec_emb"], dec_in, axis=0) * math.sqrt(D)
    y = y + positional_encoding(Lt, D)[None]
    for lp in params["dec_layers"]:
        y = decoder_layer(y, enc_out, lp, dec_self_mask, cross_mask, nhead)
    h2d = y.reshape(B * Lt, D)

    # copy distribution over source positions, reduced to the target tokens
    enc_key = linear(enc_out.reshape(B * Ls, D),
                     params["w_copy"], params["b_copy"]).reshape(B, Ls, D)
    # TODO(synk): get_generate_and_copy_meta_tensor in the original repo matches
    # surface word strings between src/tgt sentences; approximated here by
    # token-id equality (shared integer vocabulary).
    copy_idx_mask = ((dec_tgt[:, :, None] == src_inputs[:, None, :])
                     & (~src_pad[:, None, :])).astype(jnp.float32)
    copy_tok_p = copy_attention_tok(y, enc_key, cross_mask, copy_idx_mask)  # (B, Lt)

    gen_mask = (dec_tgt != UNK_ID).astype(jnp.float32)

    # TODO(synk): CopyDecoderTransformer source is unavailable; returning per-token
    # log P(tgt_token) under the gated generate/copy mixture as "decoder_output".
    logp = vocab_tail(h2d, params["w_gen"], params["b_gen"],
                      params["w_gate"], params["b_gate"],
                      dec_tgt.reshape(B * Lt, 1).astype(jnp.int32),
                      gen_mask.reshape(B * Lt, 1),
                      copy_tok_p.reshape(B * Lt, 1))
    return logp.reshape(B, Lt)


# ------------------------------- param init ----------------------------------

def init_params(key, src_V, tgt_V, D, H, nlayers):
    keys = iter(jax.random.split(key, 1024))
    nrm = lambda shape: jax.random.normal(next(keys), shape, jnp.float32) * 0.02
    w16 = lambda shape: nrm(shape).astype(jnp.bfloat16)      # bf16 weight storage
    zeros = lambda n: jnp.zeros((n,), jnp.float32)
    ones = lambda n: jnp.ones((n,), jnp.float32)

    def self_attn():
        wqkv = jnp.concatenate([nrm((D, D)), nrm((D, D)), nrm((D, D))], axis=1)
        return dict(wqkv=wqkv.astype(jnp.bfloat16), bqkv=zeros(3 * D),
                    wo=w16((D, D)), bo=zeros(D))

    def cross_attn():
        wkv = jnp.concatenate([nrm((D, D)), nrm((D, D))], axis=1)
        return dict(wq=w16((D, D)), bq=zeros(D),
                    wkv=wkv.astype(jnp.bfloat16), bkv=zeros(2 * D),
                    wo=w16((D, D)), bo=zeros(D))

    def enc_layer():
        return dict(attn=self_attn(),
                    ln1_g=ones(D), ln1_b=zeros(D),
                    w1=w16((D, H)), b1=zeros(H),
                    w2=w16((H, D)), b2=zeros(D),
                    ln2_g=ones(D), ln2_b=zeros(D))

    def dec_layer():
        return dict(self_attn=self_attn(), cross_attn=cross_attn(),
                    ln1_g=ones(D), ln1_b=zeros(D),
                    ln2_g=ones(D), ln2_b=zeros(D),
                    w1=w16((D, H)), b1=zeros(H),
                    w2=w16((H, D)), b2=zeros(D),
                    ln3_g=ones(D), ln3_b=zeros(D))

    enc_emb = nrm((src_V, D)).at[PAD_ID].set(0.0)            # padding_idx zeroed
    dec_emb = nrm((tgt_V, D)).at[PAD_ID].set(0.0)
    return dict(enc_emb=enc_emb, dec_emb=dec_emb,
                enc_layers=[enc_layer() for _ in range(nlayers)],
                dec_layers=[dec_layer() for _ in range(nlayers)],
                w_gen=w16((D, tgt_V)), b_gen=zeros(tgt_V),
                w_copy=w16((D, D)), b_copy=zeros(D),
                w_gate=nrm((D, 1)), b_gate=zeros(1))          # gate kept f32 (tiny)


# ---------------------------------- main --------------------------------------

if __name__ == "__main__":
    B, Ls, Lt = 2, 8, 8
    src_V, tgt_V = 64, 64
    D, H, nlayers, nhead = 32, 64, 2, 4

    key = jax.random.PRNGKey(0)
    k_src, k_tgt, k_par = jax.random.split(key, 3)

    src_inputs = jax.random.randint(k_src, (B, Ls), 2, src_V, dtype=jnp.int32)
    lengths = jnp.array([Ls, Ls - 2], dtype=jnp.int32)
    src_pad = jnp.arange(Ls)[None, :] >= lengths[:, None]
    src_inputs = jnp.where(src_pad, PAD_ID, src_inputs)

    tgt_inputs = jax.random.randint(k_tgt, (B, Lt + 1), 2, tgt_V, dtype=jnp.int32)
    tgt_inputs = tgt_inputs.at[:, 0].set(2)         # boundary (BOS) symbol

    params = init_params(k_par, src_V, tgt_V, D, H, nlayers)

    out = copy_transformer_forward(params, src_inputs, tgt_inputs, lengths, nhead)
    out = jax.block_until_ready(out)
    assert out.shape == (B, Lt) and bool(jnp.all(jnp.isfinite(out)))
    print("KERNEL_OK")
</pallas_src>

<mosaic_0001>
module attributes {stable_mosaic.version = 11 : i64} {
  func.func @_linear_kernel(%arg0: i32, %arg1: i32, %arg2: i32, %arg3: memref<16x128xf32, #tpu.memory_space<vmem>>, %arg4: memref<128x128xbf16, #tpu.memory_space<vmem>>, %arg5: memref<1x128xf32, #tpu.memory_space<vmem>>, %arg6: memref<16x128xf32, #tpu.memory_space<vmem>>, %arg7: memref<16x128xf32, #tpu.memory_space<vmem>>) attributes {dimension_semantics = [#tpu.dimension_semantics<parallel>, #tpu.dimension_semantics<parallel>, #tpu.dimension_semantics<arbitrary>], iteration_bounds = array<i64: 1, 1, 1>, scalar_prefetch = 0 : i64, scratch_operands = 1 : i64, tpu.core_type = #tpu.core_type<tc>, window_params = [{transform_indices = @transform_0, window_bounds = array<i64: 16, 128>}, {transform_indices = @transform_1, window_bounds = array<i64: 128, 128>}, {transform_indices = @transform_2, window_bounds = array<i64: 1, 128>}, {transform_indices = @transform_3, window_bounds = array<i64: 16, 128>}]} {
    %c0_i32 = arith.constant 0 : i32
    %0 = arith.cmpi eq, %arg2, %c0_i32 : i32
    %1 = arith.extui %0 : i1 to i32
    %c0_i32_0 = arith.constant 0 : i32
    %2 = arith.cmpi ne, %1, %c0_i32_0 : i32
    scf.if %2 {
      %cst_10 = arith.constant 0.000000e+00 : f32
      %13 = vector.broadcast %cst_10 : f32 to vector<16x128xf32>
      %c0_11 = arith.constant 0 : index
      %c0_12 = arith.constant 0 : index
      %14 = vector.load %arg7[%c0_11, %c0_12] : memref<16x128xf32, #tpu.memory_space<vmem>>, vector<16x128xf32>
      tpu.vector_store %arg7[%c0_11, %c0_12], %13 {strides = array<i32>} : memref<16x128xf32, #tpu.memory_space<vmem>>, vector<16x128xf32>,
    } else {
    }
    %c0 = arith.constant 0 : index
    %c0_1 = arith.constant 0 : index
    %3 = vector.load %arg7[%c0, %c0_1] : memref<16x128xf32, #tpu.memory_space<vmem>>, vector<16x128xf32>
    %c0_2 = arith.constant 0 : index
    %c0_3 = arith.constant 0 : index
    %4 = vector.load %arg3[%c0_2, %c0_3] : memref<16x128xf32, #tpu.memory_space<vmem>>, vector<16x128xf32>
    %5 = arith.truncf %4 : vector<16x128xf32> to vector<16x128xbf16>
    %c0_4 = arith.constant 0 : index
    %c0_5 = arith.constant 0 : index
    %6 = vector.load %arg4[%c0_4, %c0_5] : memref<128x128xbf16, #tpu.memory_space<vmem>>, vector<128x128xbf16>
    %cst = arith.constant dense<0.000000e+00> : vector<16x128xf32>
    %7 = tpu.matmul %5, %6, %cst {dimension_numbers = #tpu.dot_dimension_numbers<[1], [0], [0], [1], [0, 0, 1, 1], [], []>} : vector<16x128xbf16>, vector<128x128xbf16>, vector<16x128xf32> -> vector<16x128xf32>
    %8 = arith.addf %3, %7 : vector<16x128xf32>
    %c0_6 = arith.constant 0 : index
    %c0_7 = arith.constant 0 : index
    %9 = vector.load %arg7[%c0_6, %c0_7] : memref<16x128xf32, #tpu.memory_space<vmem>>, vector<16x128xf32>
    tpu.vector_store %arg7[%c0_6, %c0_7], %8 {strides = array<i32>} : memref<16x128xf32, #tpu.memory_space<vmem>>, vector<16x128xf32>,
    %c0_i32_8 = arith.constant 0 : i32
    %10 = arith.cmpi eq, %arg2, %c0_i32_8 : i32
    %11 = arith.extui %10 : i1 to i32
    %c0_i32_9 = arith.constant 0 : i32
    %12 = arith.cmpi ne, %11, %c0_i32_9 : i32
    scf.if %12 {
      %c0_10 = arith.constant 0 : index
      %c0_11 = arith.constant 0 : index
      %13 = vector.load %arg7[%c0_10, %c0_11] : memref<16x128xf32, #tpu.memory_space<vmem>>, vector<16x128xf32>
      %c0_12 = arith.constant 0 : index
      %c0_13 = arith.constant 0 : index
      %14 = vector.load %arg5[%c0_12, %c0_13] : memref<1x128xf32, #tpu.memory_space<vmem>>, vector<1x128xf32>
      %15 = vector.broadcast %14 : vector<1x128xf32> to vector<16x128xf32>
      %16 = arith.addf %13, %15 : vector<16x128xf32>
      %c0_14 = arith.constant 0 : index
      %c0_15 = arith.constant 0 : index
      %17 = vector.load %arg6[%c0_14, %c0_15] : memref<16x128xf32, #tpu.memory_space<vmem>>, vector<16x128xf32>
      tpu.vector_store %arg6[%c0_14, %c0_15], %16 {strides = array<i32>} : memref<16x128xf32, #tpu.memory_space<vmem>>, vector<16x128xf32>,
    } else {
    }
    return
  }
  func.func @transform_0(%arg0: i32, %arg1: i32, %arg2: i32) -> (i32, i32) {
    %c0_i32 = arith.constant 0 : i32
    return %arg0, %arg2 : i32, i32
  }
  func.func @transform_1(%arg0: i32, %arg1: i32, %arg2: i32) -> (i32, i32) {
    %c0_i32 = arith.constant 0 : i32
    return %arg2, %arg1 : i32, i32
  }
  func.func @transform_2(%arg0: i32, %arg1: i32, %arg2: i32) -> (i32, i32) {
    %c0_i32 = arith.constant 0 : i32
    %c0_i32_0 = arith.constant 0 : i32
    return %c0_i32, %arg1 : i32, i32
  }
  func.func @transform_3(%arg0: i32, %arg1: i32, %arg2: i32) -> (i32, i32) {
    %c0_i32 = arith.constant 0 : i32
    return %arg0, %arg1 : i32, i32
  }
}

</mosaic_0001>

<llo_original>
// kernel: tpu_custom_call.1
$region0: #{tpu_custom_call.1}
  #allocation0 [shape = 'u32[]', space=smem, size = 0x4, offset = 0x4, fixed_abs, tag = 'smem constant byte address 0x4 - core index']
  #allocation1 [shape = 'u32[72,128]{1,0:T(1,128)}', space=vmem, size = 0x9000, scoped, tag = 'internal scratch']
  #allocation2 [shape = 'f32[16,128]{1,0:T(8,128)}', space=vmem, size = 0x2000, scoped, tag = 'scratch operand']
  %s0 = inlined_call_operand.hbm [shape: f32[16,128], index: 0, kind: input, shape index: {}]
  %s1 = inlined_call_operand.hbm [shape: bf16[128,128], index: 1, kind: input, shape index: {}]
  %s2 = inlined_call_operand.vmem [shape: f32[1,128], index: 2, kind: input, shape index: {}]
  %s3 = inlined_call_operand.hbm [shape: f32[16,128], index: 3, kind: output, shape index: {}]
  %s4 = sld [smem:[#allocation0]]
  $region38: #{tpu_custom_call.1} parent=0
    _
  %s6 = ssub.s32 1, %s4
  %s7 = scalar_select 0, %s6, %s4
  $region1: #{tpu_custom_call.1} parent=0
    #allocation3 [shape = 'u8[8192]{0}', space=vmem, size = 0x2000, scoped, tag = 'input window, operand 0, single buffered']
    #allocation4 [shape = 's32[1]{0}', space=sflag, size = 0x4, scoped, tag = 'scoped memory for tpu_custom_call.1']
    #allocation5 [shape = 's32[1]{0}', space=sflag, size = 0x4, scoped, tag = 'scoped memory for tpu_custom_call.1']
    #allocation6 [shape = 'u8[32768]{0}', space=vmem, size = 0x8000, scoped, tag = 'input window, operand 1, single buffered']
    #allocation7 [shape = 's32[1]{0}', space=sflag, size = 0x4, scoped, tag = 'scoped memory for tpu_custom_call.1']
    #allocation8 [shape = 'u8[8192]{0}', space=vmem, size = 0x2000, scoped, tag = 'output window, operand 0, single buffered']
    %8 = vsyncpa [#allocation4], 0
    %9 = vsyncpa [#allocation7], 0
    %10 = vsyncpa [#allocation5], 0
    // Predicated region
    $region2: #{tpu_custom_call.1} parent=1 // pred_check
      _
    $region3: #{tpu_custom_call.1} parent=1 // pred_check_branch
      %12 = sbr.rel (0) target = $region5
    $region4: #{tpu_custom_call.1} parent=1 // pred_region
      %14 = vsyncadd [#allocation4], 0
      %s15 = sshll.u32 %s0, 4
      %s16 = int_to_ptr.hbm [resolvable:$true] %s15
      %s17 = sshll.u32 [#allocation3], 4
      %s18 = int_to_ptr.vmem [resolvable:$true] %s17
      %23 = dma.hbm_to_vmem [thread:$0]  %s16, 256, %s18, [#allocation4], 128, 128, 8
    $region5: #{tpu_custom_call.1} parent=1 // pred_fallthru
      _
    // Predicated region
    $region6: #{tpu_custom_call.1} parent=1 // pred_check
      _
    $region7: #{tpu_custom_call.1} parent=1 // pred_check_branch
      %25 = sbr.rel (0) target = $region9
    $region8: #{tpu_custom_call.1} parent=1 // pred_region
      %27 = vsyncadd [#allocation7], 0
      %s28 = sshll.u32 %s1, 4
      %s29 = int_to_ptr.hbm [resolvable:$true] %s28
      %s30 = sshll.u32 [#allocation6], 4
      %s31 = int_to_ptr.vmem [resolvable:$true] %s30
      %36 = dma.hbm_to_vmem [thread:$0]  %s29, 1024, %s31, [#allocation7], 64, 64, 4
    $region9: #{tpu_custom_call.1} parent=1 // pred_fallthru
      _
    // Predicated region
    $region10: #{tpu_custom_call.1} parent=1 // pred_check
      _
    $region11: #{tpu_custom_call.1} parent=1 // pred_check_branch
      %38 = sbr.rel (0) target = $region13
    $region12: #{tpu_custom_call.1} parent=1 // pred_region
      _
    $region13: #{tpu_custom_call.1} parent=1 // pred_fallthru
      _
    // Predicated region
    $region14: #{tpu_custom_call.1} parent=1 // pred_check
      _
    $region15: #{tpu_custom_call.1} parent=1 // pred_check_branch
      %40 = sbr.rel (0) target = $region17
    $region16: #{tpu_custom_call.1} parent=1 // pred_region
      %42 = dma.done [#allocation4], 256
    $region17: #{tpu_custom_call.1} parent=1 // pred_fallthru
      _
    // Predicated region
    $region18: #{tpu_custom_call.1} parent=1 // pred_check
      _
    $region19: #{tpu_custom_call.1} parent=1 // pred_check_branch
      %44 = sbr.rel (0) target = $region21
    $region20: #{tpu_custom_call.1} parent=1 // pred_region
      %46 = dma.done [#allocation7], 1024
    $region21: #{tpu_custom_call.1} parent=1 // pred_fallthru
      _
    %p47 = scmp.eq.s32.totalorder 0, 0
    // Predicated region
    $region22: #{tpu_custom_call.1} parent=1 // pred_check
      %p48 = pneg %p47
    $region23: #{tpu_custom_call.1} parent=1 // pred_check_branch
      %50 = sbr.rel (%p48) target = $region25
    $region24: #{tpu_custom_call.1} parent=1 // pred_region
      %51 = vst [vmem:[#allocation2] sm:$0xff] 0.0
      %52 = vst [vmem:[#allocation2 + $0x8] sm:$0xff] 0.0
    $region25: #{tpu_custom_call.1} parent=1 // pred_fallthru
      _
    %v53 = vld [vmem:[#allocation2] sm:$0xff]
    %v54 = vld [vmem:[#allocation2 + $0x8] sm:$0xff]
    %v55 = vld [vmem:[#allocation3] sm:$0xff]
    %v56 = vld [vmem:[#allocation3 + $0x8] sm:$0xff]
    %v57 = vpack.c.bf16 %v56, %v55
    %v58 = vld [vmem:[#allocation6] sm:$0xf]
    %v59 = vld [vmem:[#allocation6 + $0x4] sm:$0xf]
    %v60 = vld [vmem:[#allocation6 + $0x8] sm:$0xf]
    %v61 = vld [vmem:[#allocation6 + $0xc] sm:$0xf]
    %v62 = vld [vmem:[#allocation6 + $0x10] sm:$0xf]
    %v63 = vld [vmem:[#allocation6 + $0x14] sm:$0xf]
    %v64 = vld [vmem:[#allocation6 + $0x18] sm:$0xf]
    %v65 = vld [vmem:[#allocation6 + $0x1c] sm:$0xf]
    %v66 = vld [vmem:[#allocation6 + $0x20] sm:$0xf]
    %v67 = vld [vmem:[#allocation6 + $0x24] sm:$0xf]
    %v68 = vld [vmem:[#allocation6 + $0x28] sm:$0xf]
    %v69 = vld [vmem:[#allocation6 + $0x2c] sm:$0xf]
    %v70 = vld [vmem:[#allocation6 + $0x30] sm:$0xf]
    %v71 = vld [vmem:[#allocation6 + $0x34] sm:$0xf]
    %v72 = vld [vmem:[#allocation6 + $0x38] sm:$0xf]
    %v73 = vld [vmem:[#allocation6 + $0x3c] sm:$0xf]
    %v90 = vunpack.c.l.b16 %v58
    %v91 = vunpack.c.l.b16 %v59
    %v92 = vunpack.c.l.b16 %v60
    %v93 = vunpack.c.l.b16 %v61
    %v94 = vunpack.c.l.b16 %v62
    %v95 = vunpack.c.l.b16 %v63
    %v96 = vunpack.c.l.b16 %v64
    %v97 = vunpack.c.l.b16 %v65
    %v98 = vunpack.c.l.b16 %v66
    %v99 = vunpack.c.l.b16 %v67
    %v100 = vunpack.c.l.b16 %v68
    %v101 = vunpack.c.l.b16 %v69
    %v102 = vunpack.c.l.b16 %v70
    %v103 = vunpack.c.l.b16 %v71
    %v104 = vunpack.c.l.b16 %v72
    %v105 = vunpack.c.l.b16 %v73
    %v106 = vpack.c.b16 %v91, %v90
    %v107 = vpack.c.b16 %v93, %v92
    %v108 = vpack.c.b16 %v95, %v94
    %v109 = vpack.c.b16 %v97, %v96
    %v110 = vpack.c.b16 %v99, %v98
    %v111 = vpack.c.b16 %v101, %v100
    %v112 = vpack.c.b16 %v103, %v102
    %v113 = vpack.c.b16 %v105, %v104
    %122 = vmatpush.bf16.msra.mxu0 %v113
    %123 = vmatpush.bf16.msra.mxu0 %v112
    %124 = vmatpush.bf16.msra.mxu0 %v111
    %125 = vmatpush.bf16.msra.mxu0 %v110
    %126 = vmatpush.bf16.msra.mxu0 %v109
    %127 = vmatpush.bf16.msra.mxu0 %v108
    %128 = vmatpush.bf16.msra.mxu0 %v107
    %129 = vmatpush.bf16.msra.mxu0 %v106
    %130 = vmatmul.bf16.gmra.mxu0 %v57
    %v131 = vpop.f32.mrf.mxu0
    %v132 = vadd.f32 0.0, %v131
    %v133 = vpop.f32.mrf.mxu0
    %v134 = vadd.f32 0.0, %v133
    %135 = vdwg.mxu0
    %v136 = vadd.f32 %v53, %v132
    %v137 = vadd.f32 %v54, %v134
    %138 = vst [vmem:[#allocation2] sm:$0xff] %v136
    %139 = vst [vmem:[#allocation2 + $0x8] sm:$0xff] %v137
    // Predicated region
    $region26: #{tpu_custom_call.1} parent=1 // pred_check
      %p140 = pneg %p47
    $region27: #{tpu_custom_call.1} parent=1 // pred_check_branch
      %142 = sbr.rel (%p140) target = $region29
    $region28: #{tpu_custom_call.1} parent=1 // pred_region
      %v143 = vld [vmem:[#allocation2] sm:$0xff]
      %v144 = vld [vmem:[#allocation2 + $0x8] sm:$0xff]
      %v145 = vld [vmem:[%s2] sm:$0x1]
      %v147 = vperm.slane %v145, 0
      %v149 = vadd.f32 %v143, %v147
      %v150 = vadd.f32 %v144, %v147
      %151 = vst [vmem:[#allocation8] sm:$0xff] %v149
      %152 = vst [vmem:[#allocation8 + $0x8] sm:$0xff] %v150
    $region29: #{tpu_custom_call.1} parent=1 // pred_fallthru
      _
    // Predicated region
    $region30: #{tpu_custom_call.1} parent=1 // pred_check
      _
    $region31: #{tpu_custom_call.1} parent=1 // pred_check_branch
      %154 = sbr.rel (0) target = $region33
    $region32: #{tpu_custom_call.1} parent=1 // pred_region
      %156 = vsyncadd [#allocation5], 0
      %s157 = sshll.u32 [#allocation8], 4
      %s158 = int_to_ptr.vmem [resolvable:$true] %s157
      %s159 = sshll.u32 %s3, 4
      %s160 = int_to_ptr.hbm [resolvable:$true] %s159
      %165 = dma.vmem_to_hbm [thread:$0]  %s158, 256, %s160, [#allocation5], 128, 128, 8
    $region33: #{tpu_custom_call.1} parent=1 // pred_fallthru
      _
    // Predicated region
    $region34: #{tpu_custom_call.1} parent=1 // pred_check
      _
    $region35: #{tpu_custom_call.1} parent=1 // pred_check_branch
      %167 = sbr.rel (0) target = $region37
    $region36: #{tpu_custom_call.1} parent=1 // pred_region
      %169 = dma.done [#allocation5], 256
    $region37: #{tpu_custom_call.1} parent=1 // pred_fallthru
      _
    %170 = vsyncpa [#allocation4], 1
    %171 = vsyncpa [#allocation7], 1
    %172 = vsyncpa [#allocation5], 1

</llo_original>
